<compile_context>
chip_gen: v7x
topology: tpu7x:2x2x1
jax: 0.10.0
libtpu: 0.0.40
codegen_flags: <defaults>
</compile_context>

<pallas_src>
import jax
import jax.numpy as jnp
from jax import lax
from jax.experimental import pallas as pl
from jax.experimental.pallas import tpu as pltpu

BN_EPS = 1e-3  # scvi FCLayers uses BatchNorm1d(..., eps=0.001, momentum=0.01)


def _round_up(a, b):
    return ((a + b - 1) // b) * b


def classifier_kernel(x_ref, w1_ref, b1_ref, w2_ref, b2_ref, out_ref):
    """One batch tile: fused (BN-folded) Linear -> ReLU -> Linear -> Softmax."""
    # First linear layer (BatchNorm already folded into w1/b1 by the wrapper).
    h = jnp.dot(x_ref[...], w1_ref[...], preferred_element_type=jnp.float32)
    h = jnp.maximum(h + b1_ref[...], 0.0)            # bias + ReLU (dropout = id in eval)
    # Classifier head over the 128-lane padded label slab.
    logits = jnp.dot(h, w2_ref[...], preferred_element_type=jnp.float32) + b2_ref[...]
    m = jnp.max(logits, axis=-1, keepdims=True)
    e = jnp.exp(logits - m)                           # padded labels: exp(-1e30) == 0
    out_ref[...] = e / jnp.sum(e, axis=-1, keepdims=True)   # exact normalization


def _choose_tb(B, K, H, n_pad, tb_max=512, budget_bytes=32 << 20):
    """Largest batch tile (multiple of 8, <= tb_max) whose VMEM footprint fits.

    Note (v7x): when B >> tb_max there are naturally >= 2 batch tiles, so the
    'parallel' grid axis gives both TensorCores work; for small B a single
    tile is cheapest and megacore sharding is irrelevant.
    """
    fixed = 4 * (K * H + H * n_pad + H + n_pad)       # resident w1 / w2 / b1 / b2
    per_row = 4 * (2 * K + 2 * n_pad + 2 * H)         # x, out (double-buffered), h
    avail = max(budget_bytes - fixed, 8 * per_row)
    tb = min(tb_max, avail // per_row)
    tb = max(8, (tb // 8) * 8)
    tb = min(tb, _round_up(B, 8))
    return int(tb)


def classifier_forward(x, params, *, tb_max=512):
    B, K = x.shape
    H = params["w1"].shape[1]
    n_labels = params["w2"].shape[1]
    n_pad = _round_up(max(n_labels, 1), 128)          # lane-dense label slab

    # ---- Fold BatchNorm1d (eval mode, running stats) into the first Linear ----
    scale = params["gamma"] * lax.rsqrt(params["var"] + BN_EPS)            # [1, H]
    w1 = (params["w1"] * scale).astype(jnp.float32)                        # [K, H]
    b1 = ((params["b1"] - params["mean"]) * scale
          + params["beta"]).astype(jnp.float32)                            # [1, H]

    # ---- Pad only the tiny head tensors (labels -> 128 lanes). ----
    w2 = jnp.pad(params["w2"], ((0, 0), (0, n_pad - n_labels))).astype(jnp.float32)
    # Padded label bias = very negative (f32) -> exp underflows cleanly to 0.
    b2 = jnp.pad(params["b2"], ((0, 0), (0, n_pad - n_labels)),
                 constant_values=-1e30).astype(jnp.float32)

    tb = _choose_tb(B, K, H, n_pad, tb_max=tb_max)
    grid = (pl.cdiv(B, tb),)

    # Rough per-call VMEM need; cap well below v7x's 64 MiB per-TC VMEM.
    vmem_need = 4 * (K * H + H * n_pad + H + n_pad) + 4 * tb * (2 * K + 2 * n_pad + 2 * H)
    vmem_limit = int(min(48 << 20, max(16 << 20, 2 * vmem_need)))

    cost = pl.CostEstimate(
        flops=2 * B * K * H + 2 * B * H * n_pad,
        transcendentals=B * n_pad,
        bytes_accessed=4 * (B * K + K * H + H * n_pad + B * n_pad + H + n_pad),
    )

    out_padded = pl.pallas_call(
        classifier_kernel,
        out_shape=jax.ShapeDtypeStruct((B, n_pad), jnp.float32),
        grid=grid,
        in_specs=[
            pl.BlockSpec((tb, K), lambda i: (i, 0)),       # x: streamed per batch tile
            pl.BlockSpec((K, H), lambda i: (0, 0)),        # w1: VMEM-resident
            pl.BlockSpec((1, H), lambda i: (0, 0)),        # b1: resident
            pl.BlockSpec((H, n_pad), lambda i: (0, 0)),    # w2: resident
            pl.BlockSpec((1, n_pad), lambda i: (0, 0)),    # b2: resident
        ],
        out_specs=pl.BlockSpec((tb, n_pad), lambda i: (i, 0)),
        compiler_params=pltpu.CompilerParams(
            dimension_semantics=("parallel",),
            vmem_limit_bytes=vmem_limit,
        ),
        cost_estimate=cost,
    )(x.astype(jnp.float32), w1, b1, w2, b2)

    return out_padded[:, :n_labels]


def init_params(key, n_input, n_hidden, n_labels):
    """Deterministic init mimicking PyTorch Linear defaults
    (uniform(-1/sqrt(fan_in), 1/sqrt(fan_in))) and BatchNorm1d defaults."""
    k1, k2, k3, k4 = jax.random.split(key, 4)
    lim1 = 1.0 / jnp.sqrt(jnp.float32(n_input))
    lim2 = 1.0 / jnp.sqrt(jnp.float32(n_hidden))
    return {
        "w1": jax.random.uniform(k1, (n_input, n_hidden), jnp.float32, -lim1, lim1),
        "b1": jax.random.uniform(k2, (1, n_hidden), jnp.float32, -lim1, lim1),
        "gamma": jnp.ones((1, n_hidden), jnp.float32),
        "beta": jnp.zeros((1, n_hidden), jnp.float32),
        "mean": jnp.zeros((1, n_hidden), jnp.float32),
        "var": jnp.ones((1, n_hidden), jnp.float32),
        "w2": jax.random.uniform(k3, (n_hidden, n_labels), jnp.float32, -lim2, lim2),
        "b2": jax.random.uniform(k4, (1, n_labels), jnp.float32, -lim2, lim2),
    }


def reference_forward(x, p):
    """Pure-JAX f32 reference (eval-mode PyTorch semantics)."""
    hp = lax.Precision.HIGHEST
    h = jnp.dot(x, p["w1"], precision=hp) + p["b1"]
    h = (h - p["mean"]) * lax.rsqrt(p["var"] + BN_EPS) * p["gamma"] + p["beta"]
    h = jnp.maximum(h, 0.0)
    logits = jnp.dot(h, p["w2"], precision=hp) + p["b2"]
    return jax.nn.softmax(logits, axis=-1)


if __name__ == "__main__":
    key = jax.random.PRNGKey(0)
    kx, kp = jax.random.split(key)

    # Small, non-tile-aligned shapes to exercise the tiling path.
    B, n_input, n_hidden, n_labels = 200, 300, 128, 10
    x = jax.random.normal(kx, (B, n_input), jnp.float32)
    params = init_params(kp, n_input, n_hidden, n_labels)

    out = classifier_forward(x, params)
    out = jax.block_until_ready(out)

    ref = reference_forward(x, params)
    assert out.shape == (B, n_labels)
    max_err = float(jnp.max(jnp.abs(out - ref)))
    assert max_err < 2e-3, max_err
    assert bool(jnp.all(jnp.abs(jnp.sum(out, axis=-1) - 1.0) < 1e-5))
    assert float(jnp.mean(jnp.argmax(out, -1) == jnp.argmax(ref, -1))) > 0.99

    print("KERNEL_OK")
</pallas_src>

<mosaic_0001>
module attributes {stable_mosaic.version = 11 : i64} {
  func.func @classifier_kernel(%arg0: i32, %arg1: memref<200x300xf32, #tpu.memory_space<vmem>>, %arg2: memref<300x128xf32, #tpu.memory_space<vmem>>, %arg3: memref<1x128xf32, #tpu.memory_space<vmem>>, %arg4: memref<128x128xf32, #tpu.memory_space<vmem>>, %arg5: memref<1x128xf32, #tpu.memory_space<vmem>>, %arg6: memref<200x128xf32, #tpu.memory_space<vmem>>) attributes {dimension_semantics = [#tpu.dimension_semantics<parallel>], iteration_bounds = array<i64: 1>, scalar_prefetch = 0 : i64, scratch_operands = 0 : i64, tpu.core_type = #tpu.core_type<tc>, window_params = [{transform_indices = @transform_0, window_bounds = array<i64: 200, 300>}, {pipeline_mode = #tpu.pipeline_mode<synchronous>, transform_indices = @transform_1, window_bounds = array<i64: 300, 128>}, {pipeline_mode = #tpu.pipeline_mode<synchronous>, transform_indices = @transform_2, window_bounds = array<i64: 1, 128>}, {pipeline_mode = #tpu.pipeline_mode<synchronous>, transform_indices = @transform_3, window_bounds = array<i64: 128, 128>}, {pipeline_mode = #tpu.pipeline_mode<synchronous>, transform_indices = @transform_4, window_bounds = array<i64: 1, 128>}, {transform_indices = @transform_5, window_bounds = array<i64: 200, 128>}]} {
    %c0 = arith.constant 0 : index
    %c0_0 = arith.constant 0 : index
    %0 = vector.load %arg1[%c0, %c0_0] : memref<200x300xf32, #tpu.memory_space<vmem>>, vector<200x300xf32>
    %c0_1 = arith.constant 0 : index
    %c0_2 = arith.constant 0 : index
    %1 = vector.load %arg2[%c0_1, %c0_2] : memref<300x128xf32, #tpu.memory_space<vmem>>, vector<300x128xf32>
    %cst = arith.constant dense<0.000000e+00> : vector<200x128xf32>
    %2 = tpu.matmul %0, %1, %cst {dimension_numbers = #tpu.dot_dimension_numbers<[1], [0], [0], [1], [0, 0, 1, 1], [], []>} : vector<200x300xf32>, vector<300x128xf32>, vector<200x128xf32> -> vector<200x128xf32>
    %c0_3 = arith.constant 0 : index
    %c0_4 = arith.constant 0 : index
    %3 = vector.load %arg3[%c0_3, %c0_4] : memref<1x128xf32, #tpu.memory_space<vmem>>, vector<1x128xf32>
    %4 = vector.broadcast %3 : vector<1x128xf32> to vector<200x128xf32>
    %5 = arith.addf %2, %4 : vector<200x128xf32>
    %cst_5 = arith.constant 0.000000e+00 : f32
    %6 = vector.broadcast %cst_5 : f32 to vector<200x128xf32>
    %7 = arith.maximumf %5, %6 : vector<200x128xf32>
    %c0_6 = arith.constant 0 : index
    %c0_7 = arith.constant 0 : index
    %8 = vector.load %arg4[%c0_6, %c0_7] : memref<128x128xf32, #tpu.memory_space<vmem>>, vector<128x128xf32>
    %cst_8 = arith.constant dense<0.000000e+00> : vector<200x128xf32>
    %9 = tpu.matmul %7, %8, %cst_8 {dimension_numbers = #tpu.dot_dimension_numbers<[1], [0], [0], [1], [0, 0, 1, 1], [], []>} : vector<200x128xf32>, vector<128x128xf32>, vector<200x128xf32> -> vector<200x128xf32>
    %c0_9 = arith.constant 0 : index
    %c0_10 = arith.constant 0 : index
    %10 = vector.load %arg5[%c0_9, %c0_10] : memref<1x128xf32, #tpu.memory_space<vmem>>, vector<1x128xf32>
    %11 = vector.broadcast %10 : vector<1x128xf32> to vector<200x128xf32>
    %12 = arith.addf %9, %11 : vector<200x128xf32>
    %cst_11 = arith.constant dense<0xFF800000> : vector<200xf32>
    %13 = vector.multi_reduction <maximumf>, %12, %cst_11 [1] : vector<200x128xf32> to vector<200xf32>
    %14 = vector.shape_cast %13 : vector<200xf32> to vector<200x1xf32>
    %15 = vector.broadcast %14 : vector<200x1xf32> to vector<200x128xf32>
    %16 = arith.subf %12, %15 : vector<200x128xf32>
    %17 = math.exp %16 : vector<200x128xf32>
    %cst_12 = arith.constant dense<0.000000e+00> : vector<200xf32>
    %18 = vector.multi_reduction <add>, %17, %cst_12 [1] : vector<200x128xf32> to vector<200xf32>
    %19 = vector.shape_cast %18 : vector<200xf32> to vector<200x1xf32>
    %20 = vector.broadcast %19 : vector<200x1xf32> to vector<200x128xf32>
    %21 = arith.divf %17, %20 : vector<200x128xf32>
    %c0_13 = arith.constant 0 : index
    %c0_14 = arith.constant 0 : index
    %22 = vector.load %arg6[%c0_13, %c0_14] : memref<200x128xf32, #tpu.memory_space<vmem>>, vector<200x128xf32>
    tpu.vector_store %arg6[%c0_13, %c0_14], %21 {strides = array<i32>} : memref<200x128xf32, #tpu.memory_space<vmem>>, vector<200x128xf32>,
    return
  }
  func.func @transform_0(%arg0: i32) -> (i32, i32) {
    %c0_i32 = arith.constant 0 : i32
    %c0_i32_0 = arith.constant 0 : i32
    return %arg0, %c0_i32 : i32, i32
  }
  func.func @transform_1(%arg0: i32) -> (i32, i32) {
    %c0_i32 = arith.constant 0 : i32
    %c0_i32_0 = arith.constant 0 : i32
    %c0_i32_1 = arith.constant 0 : i32
    return %c0_i32, %c0_i32_0 : i32, i32
  }
  func.func @transform_2(%arg0: i32) -> (i32, i32) {
    %c0_i32 = arith.constant 0 : i32
    %c0_i32_0 = arith.constant 0 : i32
    %c0_i32_1 = arith.constant 0 : i32
    return %c0_i32, %c0_i32_0 : i32, i32
  }
  func.func @transform_3(%arg0: i32) -> (i32, i32) {
    %c0_i32 = arith.constant 0 : i32
    %c0_i32_0 = arith.constant 0 : i32
    %c0_i32_1 = arith.constant 0 : i32
    return %c0_i32, %c0_i32_0 : i32, i32
  }
  func.func @transform_4(%arg0: i32) -> (i32, i32) {
    %c0_i32 = arith.constant 0 : i32
    %c0_i32_0 = arith.constant 0 : i32
    %c0_i32_1 = arith.constant 0 : i32
    return %c0_i32, %c0_i32_0 : i32, i32
  }
  func.func @transform_5(%arg0: i32) -> (i32, i32) {
    %c0_i32 = arith.constant 0 : i32
    %c0_i32_0 = arith.constant 0 : i32
    return %arg0, %c0_i32 : i32, i32
  }
}

</mosaic_0001>

<llo_original>
// kernel: tpu_custom_call.1
$region0: #{tpu_custom_call.1}
  #allocation0 [shape = 'u32[]', space=smem, size = 0x4, offset = 0x4, fixed_abs, tag = 'smem constant byte address 0x4 - core index']
  #allocation1 [shape = 'u32[144,128]{1,0:T(1,128)}', space=vmem, size = 0x12000, scoped, tag = 'internal scratch']
  %s0 = inlined_call_operand.hbm [shape: f32[200,300], index: 0, kind: input, shape index: {}]
  %s1 = inlined_call_operand.hbm [shape: f32[300,128], index: 1, kind: input, shape index: {}]
  %s2 = inlined_call_operand.vmem [shape: f32[1,128], index: 2, kind: input, shape index: {}]
  %s3 = inlined_call_operand.hbm [shape: f32[128,128], index: 3, kind: input, shape index: {}]
  %s4 = inlined_call_operand.vmem [shape: f32[1,128], index: 4, kind: input, shape index: {}]
  %s5 = inlined_call_operand.hbm [shape: f32[200,128], index: 5, kind: output, shape index: {}]
  %s6 = sld [smem:[#allocation0]]
  $region42: #{tpu_custom_call.1} parent=0
    _
  %s8 = ssub.s32 1, %s6
  %s9 = scalar_select 0, %s8, %s6
  $region1: #{tpu_custom_call.1} parent=0
    #allocation2 [shape = 'u8[307200]{0}', space=vmem, size = 0x4b000, scoped, tag = 'input window, operand 0, single buffered']
    #allocation3 [shape = 's32[1]{0}', space=sflag, size = 0x4, scoped, tag = 'scoped memory for tpu_custom_call.1']
    #allocation4 [shape = 's32[1]{0}', space=sflag, size = 0x4, scoped, tag = 'scoped memory for tpu_custom_call.1']
    #allocation5 [shape = 'u8[155648]{0}', space=vmem, size = 0x26000, scoped, tag = 'input window, operand 1, single buffered']
    #allocation6 [shape = 's32[1]{0}', space=sflag, size = 0x4, scoped, tag = 'scoped memory for tpu_custom_call.1']
    #allocation7 [shape = 'u8[65536]{0}', space=vmem, size = 0x10000, scoped, tag = 'input window, operand 3, single buffered']
    #allocation8 [shape = 'u8[102400]{0}', space=vmem, size = 0x19000, scoped, tag = 'output window, operand 0, single buffered']
    %10 = vsyncpa [#allocation3], 0
    %11 = vsyncpa [#allocation6], 0
    %12 = vsyncpa [#allocation4], 0
    // Predicated region
    $region2: #{tpu_custom_call.1} parent=1 // pred_check
      _
    $region3: #{tpu_custom_call.1} parent=1 // pred_check_branch
      %14 = sbr.rel (0) target = $region5
    $region4: #{tpu_custom_call.1} parent=1 // pred_region
      %s16 = ssub.s32 9600, 9600
      %17 = vsyncadd [#allocation3], %s16
      %s18 = sshll.u32 [#allocation2], 4
      %s19 = int_to_ptr.vmem [resolvable:$true] %s18
      %24 = dma.hbm_to_vmem [thread:$0]  %s0, 9600, %s19, [#allocation3], 384, 384, 24
    $region5: #{tpu_custom_call.1} parent=1 // pred_fallthru
      _
    // Predicated region
    $region6: #{tpu_custom_call.1} parent=1 // pred_check
      _
    $region7: #{tpu_custom_call.1} parent=1 // pred_check_branch
      %26 = sbr.rel (0) target = $region9
    $region8: #{tpu_custom_call.1} parent=1 // pred_region
      %s28 = ssub.s32 4864, 4864
      %29 = vsyncadd [#allocation6], %s28
      %s30 = sshll.u32 [#allocation5], 4
      %s31 = int_to_ptr.vmem [resolvable:$true] %s30
      %36 = dma.hbm_to_vmem [thread:$0]  %s1, 4864, %s31, [#allocation6], 128, 128, 8
    $region9: #{tpu_custom_call.1} parent=1 // pred_fallthru
      _
    // Predicated region
    $region10: #{tpu_custom_call.1} parent=1 // pred_check
      _
    $region11: #{tpu_custom_call.1} parent=1 // pred_check_branch
      %38 = sbr.rel (0) target = $region13
    $region12: #{tpu_custom_call.1} parent=1 // pred_region
      _
    $region13: #{tpu_custom_call.1} parent=1 // pred_fallthru
      _
    // Predicated region
    $region14: #{tpu_custom_call.1} parent=1 // pred_check
      _
    $region15: #{tpu_custom_call.1} parent=1 // pred_check_branch
      %40 = sbr.rel (0) target = $region17
    $region16: #{tpu_custom_call.1} parent=1 // pred_region
      %s42 = ssub.s32 2048, 2048
      %43 = vsyncadd [#allocation6], %s42
      %s44 = sshll.u32 [#allocation7], 4
      %s45 = int_to_ptr.vmem [resolvable:$true] %s44
      %50 = dma.hbm_to_vmem [thread:$0]  %s3, 2048, %s45, [#allocation6], 128, 128, 8
    $region17: #{tpu_custom_call.1} parent=1 // pred_fallthru
      _
    // Predicated region
    $region18: #{tpu_custom_call.1} parent=1 // pred_check
      _
    $region19: #{tpu_custom_call.1} parent=1 // pred_check_branch
      %52 = sbr.rel (0) target = $region21
    $region20: #{tpu_custom_call.1} parent=1 // pred_region
      _
    $region21: #{tpu_custom_call.1} parent=1 // pred_fallthru
      _
    // Predicated region
    $region22: #{tpu_custom_call.1} parent=1 // pred_check
      _
    $region23: #{tpu_custom_call.1} parent=1 // pred_check_branch
      %54 = sbr.rel (0) target = $region25
    $region24: #{tpu_custom_call.1} parent=1 // pred_region
      %55 = dma.done [#allocation3], 9600
    $region25: #{tpu_custom_call.1} parent=1 // pred_fallthru
      _
    // Predicated region
    $region26: #{tpu_custom_call.1} parent=1 // pred_check
      _
    $region27: #{tpu_custom_call.1} parent=1 // pred_check_branch
      %57 = sbr.rel (0) target = $region29
    $region28: #{tpu_custom_call.1} parent=1 // pred_region
      %58 = dma.done [#allocation6], 4864
    $region29: #{tpu_custom_call.1} parent=1 // pred_fallthru
      _
    // Predicated region
    $region30: #{tpu_custom_call.1} parent=1 // pred_check
      _
    $region31: #{tpu_custom_call.1} parent=1 // pred_check_branch
      %60 = sbr.rel (0) target = $region33
    $region32: #{tpu_custom_call.1} parent=1 // pred_region
      %61 = dma.done [#allocation6], 2048
    $region33: #{tpu_custom_call.1} parent=1 // pred_fallthru
      _
    %v62 = vld [vmem:[#allocation2] sm:$0xff]
    %v63 = vld [vmem:[#allocation2 + $0x8] sm:$0xff]
    %v64 = vld [vmem:[#allocation2 + $0x10] sm:$0xff]
    %v65 = vld [vmem:[#allocation2 + $0x18] sm:$0xff]
    %v66 = vld [vmem:[#allocation2 + $0x20] sm:$0xff]
    %v67 = vld [vmem:[#allocation2 + $0x28] sm:$0xff]
    %v68 = vld [vmem:[#allocation2 + $0x30] sm:$0xff]
    %v69 = vld [vmem:[#allocation2 + $0x38] sm:$0xff]
    %v70 = vld [vmem:[#allocation2 + $0x40] sm:$0xff]
    %v71 = vld [vmem:[#allocation2 + $0x48] sm:$0xff]
    %v72 = vld [vmem:[#allocation2 + $0x50] sm:$0xff]
    %v73 = vld [vmem:[#allocation2 + $0x58] sm:$0xff]
    %v74 = vld [vmem:[#allocation2 + $0x60] sm:$0xff]
    %v75 = vld [vmem:[#allocation2 + $0x68] sm:$0xff]
    %v76 = vld [vmem:[#allocation2 + $0x70] sm:$0xff]
    %v77 = vld [vmem:[#allocation2 + $0x78] sm:$0xff]
    %v78 = vld [vmem:[#allocation2 + $0x80] sm:$0xff]
    %v79 = vld [vmem:[#allocation2 + $0x88] sm:$0xff]
    %v80 = vld [vmem:[#allocation2 + $0x90] sm:$0xff]
    %v81 = vld [vmem:[#allocation2 + $0x98] sm:$0xff]
    %v82 = vld [vmem:[#allocation2 + $0xa0] sm:$0xff]
    %v83 = vld [vmem:[#allocation2 + $0xa8] sm:$0xff]
    %v84 = vld [vmem:[#allocation2 + $0xb0] sm:$0xff]
    %v85 = vld [vmem:[#allocation2 + $0xb8] sm:$0xff]
    %v86 = vld [vmem:[#allocation2 + $0xc0] sm:$0xff]
    %v87 = vld [vmem:[#allocation2 + $0xc8] sm:$0xff]
    %v88 = vld [vmem:[#allocation2 + $0xd0] sm:$0xff]
    %v89 = vld [vmem:[#allocation2 + $0xd8] sm:$0xff]
    %v90 = vld [vmem:[#allocation2 + $0xe0] sm:$0xff]
    %v91 = vld [vmem:[#allocation2 + $0xe8] sm:$0xff]
    %v92 = vld [vmem:[#allocation2 + $0xf0] sm:$0xff]
    %v93 = vld [vmem:[#allocation2 + $0xf8] sm:$0xff]
    %v94 = vld [vmem:[#allocation2 + $0x100] sm:$0xff]
    %v95 = vld [vmem:[#allocation2 + $0x108] sm:$0xff]
    %v96 = vld [vmem:[#allocation2 + $0x110] sm:$0xff]
    %v97 = vld [vmem:[#allocation2 + $0x118] sm:$0xff]
    %v98 = vld [vmem:[#allocation2 + $0x120] sm:$0xff]
    %v99 = vld [vmem:[#allocation2 + $0x128] sm:$0xff]
    %v100 = vld [vmem:[#allocation2 + $0x130] sm:$0xff]
    %v101 = vld [vmem:[#allocation2 + $0x138] sm:$0xff]
    %v102 = vld [vmem:[#allocation2 + $0x140] sm:$0xff]
    %v103 = vld [vmem:[#allocation2 + $0x148] sm:$0xff]
    %v104 = vld [vmem:[#allocation2 + $0x150] sm:$0xff]
    %v105 = vld [vmem:[#allocation2 + $0x158] sm:$0xff]
    %v106 = vld [vmem:[#allocation2 + $0x160] sm:$0xff]
    %v107 = vld [vmem:[#allocation2 + $0x168] sm:$0xff]
    %v108 = vld [vmem:[#allocation2 + $0x170] sm:$0xff]
    %v109 = vld [vmem:[#allocation2 + $0x178] sm:$0xff]
    %v110 = vld [vmem:[#allocation2 + $0x180] sm:$0xff]
    %v111 = vld [vmem:[#allocation2 + $0x188] sm:$0xff]
    %v112 = vld [vmem:[#allocation2 + $0x190] sm:$0xff]
    %v113 = vld [vmem:[#allocation2 + $0x198] sm:$0xff]
    %v114 = vld [vmem:[#allocation2 + $0x1a0] sm:$0xff]
    %v115 = vld [vmem:[#allocation2 + $0x1a8] sm:$0xff]
    %v116 = vld [vmem:[#allocation2 + $0x1b0] sm:$0xff]
    %v117 = vld [vmem:[#allocation2 + $0x1b8] sm:$0xff]
    %v118 = vld [vmem:[#allocation2 + $0x1c0] sm:$0xff]
    %v119 = vld [vmem:[#allocation2 + $0x1c8] sm:$0xff]
    %v120 = vld [vmem:[#allocation2 + $0x1d0] sm:$0xff]
    %v121 = vld [vmem:[#allocation2 + $0x1d8] sm:$0xff]
    %v122 = vld [vmem:[#allocation2 + $0x1e0] sm:$0xff]
    %v123 = vld [vmem:[#allocation2 + $0x1e8] sm:$0xff]
    %v124 = vld [vmem:[#allocation2 + $0x1f0] sm:$0xff]
    %v125 = vld [vmem:[#allocation2 + $0x1f8] sm:$0xff]
    %v126 = vld [vmem:[#allocation2 + $0x200] sm:$0xff]
    %v127 = vld [vmem:[#allocation2 + $0x208] sm:$0xff]
    %v128 = vld [vmem:[#allocation2 + $0x210] sm:$0xff]
    %v129 = vld [vmem:[#allocation2 + $0x218] sm:$0xff]
    %v130 = vld [vmem:[#allocation2 + $0x220] sm:$0xff]
    %v131 = vld [vmem:[#allocation2 + $0x228] sm:$0xff]
    %v132 = vld [vmem:[#allocation2 + $0x230] sm:$0xff]
    %v133 = vld [vmem:[#allocation2 + $0x238] sm:$0xff]
    %v134 = vld [vmem:[#allocation2 + $0x240] sm:$0xff]
    %v135 = vld [vmem:[#allocation2 + $0x248] sm:$0xff]
    %v136 = vld [vmem:[#allocation2 + $0x250] sm:$0xff]
    %v137 = vld [vmem:[#allocation5] sm:$0xff]
    %v138 = vld [vmem:[#allocation5 + $0x8] sm:$0xff]
    %v139 = vld [vmem:[#allocation5 + $0x10] sm:$0xff]
    %v140 = vld [vmem:[#allocation5 + $0x18] sm:$0xff]
    %v141 = vld [vmem:[#allocation5 + $0x20] sm:$0xff]
    %v142 = vld [vmem:[#allocation5 + $0x28] sm:$0xff]
    %v143 = vld [vmem:[#allocation5 + $0x30] sm:$0xff]
    %v144 = vld [vmem:[#allocation5 + $0x38] sm:$0xff]
    %v145 = vld [vmem:[#allocation5 + $0x40] sm:$0xff]
    %v146 = vld [vmem:[#allocation5 + $0x48] sm:$0xff]
    %v147 = vld [vmem:[#allocation5 + $0x50] sm:$0xff]
    %v148 = vld [vmem:[#allocation5 + $0x58] sm:$0xff]
    %v149 = vld [vmem:[#allocation5 + $0x60] sm:$0xff]
    %v150 = vld [vmem:[#allocation5 + $0x68] sm:$0xff]
    %v151 = vld [vmem:[#allocation5 + $0x70] sm:$0xff]
    %v152 = vld [vmem:[#allocation5 + $0x78] sm:$0xff]
    %v153 = vld [vmem:[#allocation5 + $0x80] sm:$0xff]
    %v154 = vld [vmem:[#allocation5 + $0x88] sm:$0xff]
    %v155 = vld [vmem:[#allocation5 + $0x90] sm:$0xff]
    %v156 = vld [vmem:[#allocation5 + $0x98] sm:$0xff]
    %v157 = vld [vmem:[#allocation5 + $0xa0] sm:$0xff]
    %v158 = vld [vmem:[#allocation5 + $0xa8] sm:$0xff]
    %v159 = vld [vmem:[#allocation5 + $0xb0] sm:$0xff]
    %v160 = vld [vmem:[#allocation5 + $0xb8] sm:$0xff]
    %v161 = vld [vmem:[#allocation5 + $0xc0] sm:$0xff]
    %v162 = vld [vmem:[#allocation5 + $0xc8] sm:$0xff]
    %v163 = vld [vmem:[#allocation5 + $0xd0] sm:$0xff]
    %v164 = vld [vmem:[#allocation5 + $0xd8] sm:$0xff]
    %v165 = vld [vmem:[#allocation5 + $0xe0] sm:$0xff]
    %v166 = vld [vmem:[#allocation5 + $0xe8] sm:$0xff]
    %v167 = vld [vmem:[#allocation5 + $0xf0] sm:$0xff]
    %v168 = vld [vmem:[#allocation5 + $0xf8] sm:$0xff]
    %v169 = vld [vmem:[#allocation5 + $0x100] sm:$0xff]
    %v170 = vld [vmem:[#allocation5 + $0x108] sm:$0xff]
    %v171 = vld [vmem:[#allocation5 + $0x110] sm:$0xff]
    %v172 = vld [vmem:[#allocation5 + $0x118] sm:$0xff]
    %v173 = vld [vmem:[#allocation5 + $0x120] sm:$0xff]
    %v174 = vld [vmem:[#allocation5 + $0x128] sm:$0xf]
    %v175 = vld [vmem:[%s2] sm:$0x1]
    %v177 = vlaneseq
    %v178 = vshrl.u32 %v177, 7
    %v179 = vsub.s32 0, %v178
    %v180 = vrot.slane %v175, %v179
    %vm182 = vcmask 359424
    %v184 = vsel %vm182, %v64, 0
    %v187 = vsel %vm182, %v67, 0
    %v190 = vsel %vm182, %v70, 0
    %v193 = vsel %vm182, %v73, 0
    %v196 = vsel %vm182, %v76, 0
    %v199 = vsel %vm182, %v79, 0
    %v202 = vsel %vm182, %v82, 0
    %v205 = vsel %vm182, %v85, 0
    %v208 = vsel %vm182, %v88, 0
    %v211 = vsel %vm182, %v91, 0
    %v214 = vsel %vm182, %v94, 0
    %v217 = vsel %vm182, %v97, 0
    %v220 = vsel %vm182, %v100, 0
    %v223 = vsel %vm182, %v103, 0
    %v226 = vsel %vm182, %v106, 0
    %v229 = vsel %vm182, %v109, 0
    %v232 = vsel %vm182, %v112, 0
    %v235 = vsel %vm182, %v115, 0
    %v238 = vsel %vm182, %v118, 0
    %v241 = vsel %vm182, %v121, 0
    %v244 = vsel %vm182, %v124, 0
    %v247 = vsel %vm182, %v127, 0
    %v250 = vsel %vm182, %v130, 0
    %v253 = vsel %vm182, %v133, 0
    %v256 = vsel %vm182, %v136, 0
    %vm258 = vcmask 1043456
    %v260 = vsel %vm258, %v174, 0
    %262 = vmatprep.subr.mxu0 0.0
    %263 = vmatpush1.msra.mxu0 %v137
    %264 = vmatprep.subr.mxu0 0.0
    %265 = vmatpush1.msra.mxu0 %v138
    %266 = vmatprep.subr.mxu0 0.0
    %267 = vmatpush1.msra.mxu0 %v139
    %268 = vmatprep.subr.mxu0 0.0
    %269 = vmatpush1.msra.mxu0 %v140
    %270 = vmatprep.subr.mxu0 0.0
    %271 = vmatpush1.msra.mxu0 %v141
    %272 = vmatprep.subr.mxu0 0.0
    %273 = vmatpush1.msra.mxu0 %v142
    %274 = vmatprep.subr.mxu0 0.0
    %275 = vmatpush1.msra.mxu0 %v143
    %276 = vmatprep.subr.mxu0 0.0
    %277 = vmatpush1.msra.mxu0 %v144
    %278 = vmatprep.subr.mxu0 0.0
    %279 = vmatpush1.msra.mxu0 %v145
    %280 = vmatprep.subr.mxu0 0.0
    %281 = vmatpush1.msra.mxu0 %v146
    %282 = vmatprep.subr.mxu0 0.0
    %283 = vmatpush1.msra.mxu0 %v147
    %284 = vmatprep.subr.mxu0 0.0
    %285 = vmatpush1.msra.mxu0 %v148
    %286 = vmatprep.subr.mxu0 0.0
    %287 = vmatpush1.msra.mxu0 %v149
    %288 = vmatprep.subr.mxu0 0.0
    %289 = vmatpush1.msra.mxu0 %v150
    %290 = vmatprep.subr.mxu0 0.0
    %291 = vmatpush1.msra.mxu0 %v151
    %292 = vmatprep.subr.mxu0 0.0
    %293 = vmatpush1.msra.mxu0 %v152
    %294 = vmatprep.subr.mxu0 0.0
    %295 = vmatpush1.msra.mxu0 %v153
    %296 = vmatprep.subr.mxu0 0.0
    %297 = vmatpush1.msra.mxu0 %v154
    %298 = vmatprep.subr.mxu0 0.0
    %299 = vmatpush1.msra.mxu0 %v155
    %300 = vmatprep.subr.mxu0 0.0
    %301 = vmatpush1.msra.mxu0 %v156
    %302 = vmatprep.subr.mxu0 0.0
    %303 = vmatpush1.msra.mxu0 %v157
    %304 = vmatprep.subr.mxu0 0.0
    %305 = vmatpush1.msra.mxu0 %v158
    %306 = vmatprep.subr.mxu0 0.0
    %307 = vmatpush1.msra.mxu0 %v159
    %308 = vmatprep.subr.mxu0 0.0
    %309 = vmatpush1.msra.mxu0 %v160
    %310 = vmatprep.subr.mxu0 0.0
    %311 = vmatpush1.msra.mxu0 %v161
    %312 = vmatprep.subr.mxu0 0.0
    %313 = vmatpush1.msra.mxu0 %v162
    %314 = vmatprep.subr.mxu0 0.0
    %315 = vmatpush1.msra.mxu0 %v163
    %316 = vmatprep.subr.mxu0 0.0
    %317 = vmatpush1.msra.mxu0 %v164
    %318 = vmatprep.subr.mxu0 0.0
    %319 = vmatpush1.msra.mxu0 %v165
    %320 = vmatprep.subr.mxu0 0.0
    %321 = vmatpush1.msra.mxu0 %v166
    %322 = vmatprep.subr.mxu0 0.0
    %323 = vmatpush1.msra.mxu0 %v167
    %324 = vmatprep.subr.mxu0 0.0
    %325 = vmatpush1.msra.mxu0 %v168
    %326 = vmatprep.mubr.f32.mxu0 %v63
    %327 = vmatmul.mubr.f32.gmra.mrb[0].mxu0 %v62
    %v328 = vpop.f32.mrb[0].mxu0
    %v329 = vadd.f32 %v180, %v328
    %v330 = vpop.f32.mrb[0].mxu0
    %331 = vmatprep.mubr.f32.mxu0 %v66
    %332 = vmatmul.mubr.f32.gmra.mrb[0].mxu0 %v65
    %v333 = vpop.f32.mrb[0].mxu0
    %v334 = vadd.f32 %v180, %v333
    %v335 = vpop.f32.mrb[0].mxu0
    %336 = vmatprep.mubr.f32.mxu0 %v69
    %337 = vmatmul.mubr.f32.gmra.mrb[0].mxu0 %v68
    %v338 = vpop.f32.mrb[0].mxu0
    %v339 = vadd.f32 %v180, %v338
    %v340 = vpop.f32.mrb[0].mxu0
    %341 = vmatprep.mubr.f32.mxu0 %v72
    %342 = vmatmul.mubr.f32.gmra.mrb[0].mxu0 %v71
    %v343 = vpop.f32.mrb[0].mxu0
    %v344 = vadd.f32 %v180, %v343
    %v345 = vpop.f32.mrb[0].mxu0
    %346 = vmatprep.mubr.f32.mxu0 %v75
    %347 = vmatmul.mubr.f32.gmra.mrb[0].mxu0 %v74
    %v348 = vpop.f32.mrb[0].mxu0
    %v349 = vadd.f32 %v180, %v348
    %v350 = vpop.f32.mrb[0].mxu0
    %351 = vmatprep.mubr.f32.mxu0 %v78
    %352 = vmatmul.mubr.f32.gmra.mrb[0].mxu0 %v77
    %v353 = vpop.f32.mrb[0].mxu0
    %v354 = vadd.f32 %v180, %v353
    %v355 = vpop.f32.mrb[0].mxu0
    %356 = vmatprep.mubr.f32.mxu0 %v81
    %357 = vmatmul.mubr.f32.gmra.mrb[0].mxu0 %v80
    %v358 = vpop.f32.mrb[0].mxu0
    %v359 = vadd.f32 %v180, %v358
    %v360 = vpop.f32.mrb[0].mxu0
    %361 = vmatprep.mubr.f32.mxu0 %v84
    %362 = vmatmul.mubr.f32.gmra.mrb[0].mxu0 %v83
    %v363 = vpop.f32.mrb[0].mxu0
    %v364 = vadd.f32 %v180, %v363
    %v365 = vpop.f32.mrb[0].mxu0
    %366 = vmatprep.mubr.f32.mxu0 %v87
    %367 = vmatmul.mubr.f32.gmra.mrb[0].mxu0 %v86
    %v368 = vpop.f32.mrb[0].mxu0
    %v369 = vadd.f32 %v180, %v368
    %v370 = vpop.f32.mrb[0].mxu0
    %371 = vmatprep.mubr.f32.mxu0 %v90
    %372 = vmatmul.mubr.f32.gmra.mrb[0].mxu0 %v89
    %v373 = vpop.f32.mrb[0].mxu0
    %v374 = vadd.f32 %v180, %v373
    %v375 = vpop.f32.mrb[0].mxu0
    %376 = vmatprep.mubr.f32.mxu0 %v93
    %377 = vmatmul.mubr.f32.gmra.mrb[0].mxu0 %v92
    %v378 = vpop.f32.mrb[0].mxu0
    %v379 = vadd.f32 %v180, %v378
    %v380 = vpop.f32.mrb[0].mxu0
    %381 = vmatprep.mubr.f32.mxu0 %v96
    %382 = vmatmul.mubr.f32.gmra.mrb[0].mxu0 %v95
    %v383 = vpop.f32.mrb[0].mxu0
    %v384 = vadd.f32 %v180, %v383
    %v385 = vpop.f32.mrb[0].mxu0
    %386 = vmatprep.mubr.f32.mxu0 %v99
    %387 = vmatmul.mubr.f32.gmra.mrb[0].mxu0 %v98
    %v388 = vpop.f32.mrb[0].mxu0
    %v389 = vadd.f32 %v180, %v388
    %v390 = vpop.f32.mrb[0].mxu0
    %391 = vmatprep.mubr.f32.mxu0 %v102
    %392 = vmatmul.mubr.f32.gmra.mrb[0].mxu0 %v101
    %v393 = vpop.f32.mrb[0].mxu0
    %v394 = vadd.f32 %v180, %v393
    %v395 = vpop.f32.mrb[0].mxu0
    %396 = vmatprep.mubr.f32.mxu0 %v105
    %397 = vmatmul.mubr.f32.gmra.mrb[0].mxu0 %v104
    %v398 = vpop.f32.mrb[0].mxu0
    %v399 = vadd.f32 %v180, %v398
    %v400 = vpop.f32.mrb[0].mxu0
    %401 = vmatprep.mubr.f32.mxu0 %v108
    %402 = vmatmul.mubr.f32.gmra.mrb[0].mxu0 %v107
    %v403 = vpop.f32.mrb[0].mxu0
    %v404 = vadd.f32 %v180, %v403
    %v405 = vpop.f32.mrb[0].mxu0
    %406 = vmatprep.mubr.f32.mxu0 %v111
    %407 = vmatmul.mubr.f32.gmra.mrb[0].mxu0 %v110
    %v408 = vpop.f32.mrb[0].mxu0
    %v409 = vadd.f32 %v180, %v408
    %v410 = vpop.f32.mrb[0].mxu0
    %411 = vmatprep.mubr.f32.mxu0 %v114
    %412 = vmatmul.mubr.f32.gmra.mrb[0].mxu0 %v113
    %v413 = vpop.f32.mrb[0].mxu0
    %v414 = vadd.f32 %v180, %v413
    %v415 = vpop.f32.mrb[0].mxu0
    %416 = vmatprep.mubr.f32.mxu0 %v117
    %417 = vmatmul.mubr.f32.gmra.mrb[0].mxu0 %v116
    %v418 = vpop.f32.mrb[0].mxu0
    %v419 = vadd.f32 %v180, %v418
    %v420 = vpop.f32.mrb[0].mxu0
    %421 = vmatprep.mubr.f32.mxu0 %v120
    %422 = vmatmul.mubr.f32.gmra.mrb[0].mxu0 %v119
    %v423 = vpop.f32.mrb[0].mxu0
    %v424 = vadd.f32 %v180, %v423
    %v425 = vpop.f32.mrb[0].mxu0
    %426 = vmatprep.mubr.f32.mxu0 %v123
    %427 = vmatmul.mubr.f32.gmra.mrb[0].mxu0 %v122
    %v428 = vpop.f32.mrb[0].mxu0
    %v429 = vadd.f32 %v180, %v428
    %v430 = vpop.f32.mrb[0].mxu0
    %431 = vmatprep.mubr.f32.mxu0 %v126
    %432 = vmatmul.mubr.f32.gmra.mrb[0].mxu0 %v125
    %v433 = vpop.f32.mrb[0].mxu0
    %v434 = vadd.f32 %v180, %v433
    %v435 = vpop.f32.mrb[0].mxu0
    %436 = vmatprep.mubr.f32.mxu0 %v129
    %437 = vmatmul.mubr.f32.gmra.mrb[0].mxu0 %v128
    %v438 = vpop.f32.mrb[0].mxu0
    %v439 = vadd.f32 %v180, %v438
    %v440 = vpop.f32.mrb[0].mxu0
    %441 = vmatprep.mubr.f32.mxu0 %v132
    %442 = vmatmul.mubr.f32.gmra.mrb[0].mxu0 %v131
    %v443 = vpop.f32.mrb[0].mxu0
    %v444 = vadd.f32 %v180, %v443
    %v445 = vpop.f32.mrb[0].mxu0
    %446 = vmatprep.mubr.f32.mxu0 %v135
    %447 = vmatmul.mubr.f32.gmra.mrb[0].mxu0 %v134
    %v448 = vpop.f32.mrb[0].mxu0
    %v449 = vadd.f32 %v180, %v448
    %v450 = vpop.f32.mrb[0].mxu0
    %451 = vdwg.mxu0
    %452 = vmatprep.subr.mxu0 0.0
    %453 = vmatpush1.msra.mxu0 %v169
    %454 = vmatprep.subr.mxu0 0.0
    %455 = vmatpush1.msra.mxu0 %v170
    %456 = vmatprep.subr.mxu0 0.0
    %457 = vmatpush1.msra.mxu0 %v171
    %458 = vmatprep.subr.mxu0 0.0
    %459 = vmatpush1.msra.mxu0 %v172
    %460 = vmatprep.subr.mxu0 0.0
    %461 = vmatpush1.msra.mxu0 %v173
    %462 = vmatprep.subr.mxu0 0.0
    %463 = vmatpush1.msra.mxu0 %v260
    %464 = vmatprep.subr.mxu0 0.0
    %465 = vmatpush1.msra.mxu0 0.0
    %466 = vmatprep.subr.mxu0 0.0
    %467 = vmatpush1.msra.mxu0 0.0
    %468 = vmatprep.subr.mxu0 0.0
    %469 = vmatpush1.msra.mxu0 0.0
    %470 = vmatprep.subr.mxu0 0.0
    %471 = vmatpush1.msra.mxu0 0.0
    %472 = vmatprep.subr.mxu0 0.0
    %473 = vmatpush1.msra.mxu0 0.0
    %474 = vmatprep.subr.mxu0 0.0
    %475 = vmatpush1.msra.mxu0 0.0
    %476 = vmatprep.subr.mxu0 0.0
    %477 = vmatpush1.msra.mxu0 0.0
    %478 = vmatprep.subr.mxu0 0.0
    %479 = vmatpush1.msra.mxu0 0.0
    %480 = vmatprep.subr.mxu0 0.0
    %481 = vmatpush1.msra.mxu0 0.0
    %482 = vmatprep.subr.mxu0 0.0
    %483 = vmatpush1.msra.mxu0 0.0
    %484 = vmatprep.subr.mxu0 0.0
    %485 = vmatpush1.msra.mxu0 0.0
    %486 = vmatprep.subr.mxu0 0.0
    %487 = vmatpush1.msra.mxu0 0.0
    %488 = vmatprep.subr.mxu0 0.0
    %489 = vmatpush1.msra.mxu0 0.0
    %490 = vmatprep.subr.mxu0 0.0
    %491 = vmatpush1.msra.mxu0 0.0
    %492 = vmatprep.subr.mxu0 0.0
    %493 = vmatpush1.msra.mxu0 0.0
    %494 = vmatprep.subr.mxu0 0.0
    %495 = vmatpush1.msra.mxu0 0.0
    %496 = vmatprep.subr.mxu0 0.0
    %497 = vmatpush1.msra.mxu0 0.0
    %498 = vmatprep.subr.mxu0 0.0
    %499 = vmatpush1.msra.mxu0 0.0
    %500 = vmatprep.subr.mxu0 0.0
    %501 = vmatpush1.msra.mxu0 0.0
    %502 = vmatprep.subr.mxu0 0.0
    %503 = vmatpush1.msra.mxu0 0.0
    %504 = vmatprep.subr.mxu0 0.0
    %505 = vmatpush1.msra.mxu0 0.0
    %506 = vmatprep.subr.mxu0 0.0
    %507 = vmatpush1.msra.mxu0 0.0
    %508 = vmatprep.subr.mxu0 0.0
    %509 = vmatpush1.msra.mxu0 0.0
    %510 = vmatprep.subr.mxu0 0.0
    %511 = vmatpush1.msra.mxu0 0.0
    %512 = vmatprep.subr.mxu0 0.0
    %513 = vmatpush1.msra.mxu0 0.0
    %514 = vmatprep.subr.mxu0 0.0
    %515 = vmatpush1.msra.mxu0 0.0
    %516 = vmatprep.mubr.f32.mxu0 0.0
    %517 = vmatmul.mubr.f32.gmra.mrb[0].mxu0 %v184
    %v518 = vpop.f32.mrb[0].mxu0
    %v519 = vadd.f32 %v329, %v518
    %v520 = vpop.f32.mrb[0].mxu0
    %521 = vmatprep.mubr.f32.mxu0 0.0
    %522 = vmatmul.mubr.f32.gmra.mrb[0].mxu0 %v187
    %v523 = vpop.f32.mrb[0].mxu0
    %v524 = vadd.f32 %v334, %v523
    %v525 = vpop.f32.mrb[0].mxu0
    %526 = vmatprep.mubr.f32.mxu0 0.0
    %527 = vmatmul.mubr.f32.gmra.mrb[0].mxu0 %v190
    %v528 = vpop.f32.mrb[0].mxu0
    %v529 = vadd.f32 %v339, %v528
    %v530 = vpop.f32.mrb[0].mxu0
    %531 = vmatprep.mubr.f32.mxu0 0.0
    %532 = vmatmul.mubr.f32.gmra.mrb[0].mxu0 %v193
    %v533 = vpop.f32.mrb[0].mxu0
    %v534 = vadd.f32 %v344, %v533
    %v535 = vpop.f32.mrb[0].mxu0
    %536 = vmatprep.mubr.f32.mxu0 0.0
    %537 = vmatmul.mubr.f32.gmra.mrb[0].mxu0 %v196
    %v538 = vpop.f32.mrb[0].mxu0
    %v539 = vadd.f32 %v349, %v538
    %v540 = vpop.f32.mrb[0].mxu0
    %541 = vmatprep.mubr.f32.mxu0 0.0
    %542 = vmatmul.mubr.f32.gmra.mrb[0].mxu0 %v199
    %v543 = vpop.f32.mrb[0].mxu0
    %v544 = vadd.f32 %v354, %v543
    %v545 = vpop.f32.mrb[0].mxu0
    %546 = vmatprep.mubr.f32.mxu0 0.0
    %547 = vmatmul.mubr.f32.gmra.mrb[0].mxu0 %v202
    %v548 = vpop.f32.mrb[0].mxu0
    %v549 = vadd.f32 %v359, %v548
    %v550 = vpop.f32.mrb[0].mxu0
    %551 = vmatprep.mubr.f32.mxu0 0.0
    %552 = vmatmul.mubr.f32.gmra.mrb[0].mxu0 %v205
    %v553 = vpop.f32.mrb[0].mxu0
    %v554 = vadd.f32 %v364, %v553
    %v555 = vpop.f32.mrb[0].mxu0
    %556 = vmatprep.mubr.f32.mxu0 0.0
    %557 = vmatmul.mubr.f32.gmra.mrb[0].mxu0 %v208
    %v558 = vpop.f32.mrb[0].mxu0
    %v559 = vadd.f32 %v369, %v558
    %v560 = vpop.f32.mrb[0].mxu0
    %561 = vmatprep.mubr.f32.mxu0 0.0
    %562 = vmatmul.mubr.f32.gmra.mrb[0].mxu0 %v211
    %v563 = vpop.f32.mrb[0].mxu0
    %v564 = vadd.f32 %v374, %v563
    %v565 = vpop.f32.mrb[0].mxu0
    %566 = vmatprep.mubr.f32.mxu0 0.0
    %567 = vmatmul.mubr.f32.gmra.mrb[0].mxu0 %v214
    %v568 = vpop.f32.mrb[0].mxu0
    %v569 = vadd.f32 %v379, %v568
    %v570 = vpop.f32.mrb[0].mxu0
    %571 = vmatprep.mubr.f32.mxu0 0.0
    %572 = vmatmul.mubr.f32.gmra.mrb[0].mxu0 %v217
    %v573 = vpop.f32.mrb[0].mxu0
    %v574 = vadd.f32 %v384, %v573
    %v575 = vpop.f32.mrb[0].mxu0
    %576 = vmatprep.mubr.f32.mxu0 0.0
    %577 = vmatmul.mubr.f32.gmra.mrb[0].mxu0 %v220
    %v578 = vpop.f32.mrb[0].mxu0
    %v579 = vadd.f32 %v389, %v578
    %v580 = vpop.f32.mrb[0].mxu0
    %581 = vmatprep.mubr.f32.mxu0 0.0
    %582 = vmatmul.mubr.f32.gmra.mrb[0].mxu0 %v223
    %v583 = vpop.f32.mrb[0].mxu0
    %v584 = vadd.f32 %v394, %v583
    %v585 = vpop.f32.mrb[0].mxu0
    %586 = vmatprep.mubr.f32.mxu0 0.0
    %587 = vmatmul.mubr.f32.gmra.mrb[0].mxu0 %v226
    %v588 = vpop.f32.mrb[0].mxu0
    %v589 = vadd.f32 %v399, %v588
    %v590 = vpop.f32.mrb[0].mxu0
    %591 = vmatprep.mubr.f32.mxu0 0.0
    %592 = vmatmul.mubr.f32.gmra.mrb[0].mxu0 %v229
    %v593 = vpop.f32.mrb[0].mxu0
    %v594 = vadd.f32 %v404, %v593
    %v595 = vpop.f32.mrb[0].mxu0
    %596 = vmatprep.mubr.f32.mxu0 0.0
    %597 = vmatmul.mubr.f32.gmra.mrb[0].mxu0 %v232
    %v598 = vpop.f32.mrb[0].mxu0
    %v599 = vadd.f32 %v409, %v598
    %v600 = vpop.f32.mrb[0].mxu0
    %601 = vmatprep.mubr.f32.mxu0 0.0
    %602 = vmatmul.mubr.f32.gmra.mrb[0].mxu0 %v235
    %v603 = vpop.f32.mrb[0].mxu0
    %v604 = vadd.f32 %v414, %v603
    %v605 = vpop.f32.mrb[0].mxu0
    %606 = vmatprep.mubr.f32.mxu0 0.0
    %607 = vmatmul.mubr.f32.gmra.mrb[0].mxu0 %v238
    %v608 = vpop.f32.mrb[0].mxu0
    %v609 = vadd.f32 %v419, %v608
    %v610 = vpop.f32.mrb[0].mxu0
    %611 = vmatprep.mubr.f32.mxu0 0.0
    %612 = vmatmul.mubr.f32.gmra.mrb[0].mxu0 %v241
    %v613 = vpop.f32.mrb[0].mxu0
    %v614 = vadd.f32 %v424, %v613
    %v615 = vpop.f32.mrb[0].mxu0
    %616 = vmatprep.mubr.f32.mxu0 0.0
    %617 = vmatmul.mubr.f32.gmra.mrb[0].mxu0 %v244
    %v618 = vpop.f32.mrb[0].mxu0
    %v619 = vadd.f32 %v429, %v618
    %v620 = vpop.f32.mrb[0].mxu0
    %621 = vmatprep.mubr.f32.mxu0 0.0
    %622 = vmatmul.mubr.f32.gmra.mrb[0].mxu0 %v247
    %v623 = vpop.f32.mrb[0].mxu0
    %v624 = vadd.f32 %v434, %v623
    %v625 = vpop.f32.mrb[0].mxu0
    %626 = vmatprep.mubr.f32.mxu0 0.0
    %627 = vmatmul.mubr.f32.gmra.mrb[0].mxu0 %v250
    %v628 = vpop.f32.mrb[0].mxu0
    %v629 = vadd.f32 %v439, %v628
    %v630 = vpop.f32.mrb[0].mxu0
    %631 = vmatprep.mubr.f32.mxu0 0.0
    %632 = vmatmul.mubr.f32.gmra.mrb[0].mxu0 %v253
    %v633 = vpop.f32.mrb[0].mxu0
    %v634 = vadd.f32 %v444, %v633
    %v635 = vpop.f32.mrb[0].mxu0
    %636 = vmatprep.mubr.f32.mxu0 0.0
    %637 = vmatmul.mubr.f32.gmra.mrb[0].mxu0 %v256
    %v638 = vpop.f32.mrb[0].mxu0
    %v639 = vadd.f32 %v449, %v638
    %v640 = vpop.f32.mrb[0].mxu0
    %641 = vdwg.mxu0
    %v642 = vmax.f32 %v519, 0.0
    %v643 = vmax.f32 %v524, 0.0
    %v644 = vmax.f32 %v529, 0.0
    %v645 = vmax.f32 %v534, 0.0
    %v646 = vmax.f32 %v539, 0.0
    %v647 = vmax.f32 %v544, 0.0
    %v648 = vmax.f32 %v549, 0.0
    %v649 = vmax.f32 %v554, 0.0
    %v650 = vmax.f32 %v559, 0.0
    %v651 = vmax.f32 %v564, 0.0
    %v652 = vmax.f32 %v569, 0.0
    %v653 = vmax.f32 %v574, 0.0
    %v654 = vmax.f32 %v579, 0.0
    %v655 = vmax.f32 %v584, 0.0
    %v656 = vmax.f32 %v589, 0.0
    %v657 = vmax.f32 %v594, 0.0
    %v658 = vmax.f32 %v599, 0.0
    %v659 = vmax.f32 %v604, 0.0
    %v660 = vmax.f32 %v609, 0.0
    %v661 = vmax.f32 %v614, 0.0
    %v662 = vmax.f32 %v619, 0.0
    %v663 = vmax.f32 %v624, 0.0
    %v664 = vmax.f32 %v629, 0.0
    %v665 = vmax.f32 %v634, 0.0
    %v666 = vmax.f32 %v639, 0.0
    %v667 = vld [vmem:[#allocation7] sm:$0xff]
    %v668 = vld [vmem:[#allocation7 + $0x8] sm:$0xff]
    %v669 = vld [vmem:[#allocation7 + $0x10] sm:$0xff]
    %v670 = vld [vmem:[#allocation7 + $0x18] sm:$0xff]
    %v671 = vld [vmem:[#allocation7 + $0x20] sm:$0xff]
    %v672 = vld [vmem:[#allocation7 + $0x28] sm:$0xff]
    %v673 = vld [vmem:[#allocation7 + $0x30] sm:$0xff]
    %v674 = vld [vmem:[#allocation7 + $0x38] sm:$0xff]
    %v675 = vld [vmem:[#allocation7 + $0x40] sm:$0xff]
    %v676 = vld [vmem:[#allocation7 + $0x48] sm:$0xff]
    %v677 = vld [vmem:[#allocation7 + $0x50] sm:$0xff]
    %v678 = vld [vmem:[#allocation7 + $0x58] sm:$0xff]
    %v679 = vld [vmem:[#allocation7 + $0x60] sm:$0xff]
    %v680 = vld [vmem:[#allocation7 + $0x68] sm:$0xff]
    %v681 = vld [vmem:[#allocation7 + $0x70] sm:$0xff]
    %v682 = vld [vmem:[#allocation7 + $0x78] sm:$0xff]
    %v683 = vld [vmem:[%s4] sm:$0x1]
    %v685 = vlaneseq
    %v686 = vshrl.u32 %v685, 7
    %v687 = vsub.s32 0, %v686
    %v688 = vrot.slane %v683, %v687
    %690 = vmatprep.subr.mxu0 0.0
    %691 = vmatpush1.msra.mxu0 %v667
    %692 = vmatprep.subr.mxu0 0.0
    %693 = vmatpush1.msra.mxu0 %v668
    %694 = vmatprep.subr.mxu0 0.0
    %695 = vmatpush1.msra.mxu0 %v669
    %696 = vmatprep.subr.mxu0 0.0
    %697 = vmatpush1.msra.mxu0 %v670
    %698 = vmatprep.subr.mxu0 0.0
    %699 = vmatpush1.msra.mxu0 %v671
    %700 = vmatprep.subr.mxu0 0.0
    %701 = vmatpush1.msra.mxu0 %v672
    %702 = vmatprep.subr.mxu0 0.0
    %703 = vmatpush1.msra.mxu0 %v673
    %704 = vmatprep.subr.mxu0 0.0
    %705 = vmatpush1.msra.mxu0 %v674
    %706 = vmatprep.subr.mxu0 0.0
    %707 = vmatpush1.msra.mxu0 %v675
    %708 = vmatprep.subr.mxu0 0.0
    %709 = vmatpush1.msra.mxu0 %v676
    %710 = vmatprep.subr.mxu0 0.0
    %711 = vmatpush1.msra.mxu0 %v677
    %712 = vmatprep.subr.mxu0 0.0
    %713 = vmatpush1.msra.mxu0 %v678
    %714 = vmatprep.subr.mxu0 0.0
    %715 = vmatpush1.msra.mxu0 %v679
    %716 = vmatprep.subr.mxu0 0.0
    %717 = vmatpush1.msra.mxu0 %v680
    %718 = vmatprep.subr.mxu0 0.0
    %719 = vmatpush1.msra.mxu0 %v681
    %720 = vmatprep.subr.mxu0 0.0
    %721 = vmatpush1.msra.mxu0 %v682
    %722 = vmatprep.subr.mxu0 0.0
    %723 = vmatpush1.msra.mxu0 0.0
    %724 = vmatprep.subr.mxu0 0.0
    %725 = vmatpush1.msra.mxu0 0.0
    %726 = vmatprep.subr.mxu0 0.0
    %727 = vmatpush1.msra.mxu0 0.0
    %728 = vmatprep.subr.mxu0 0.0
    %729 = vmatpush1.msra.mxu0 0.0
    %730 = vmatprep.subr.mxu0 0.0
    %731 = vmatpush1.msra.mxu0 0.0
    %732 = vmatprep.subr.mxu0 0.0
    %733 = vmatpush1.msra.mxu0 0.0
    %734 = vmatprep.subr.mxu0 0.0
    %735 = vmatpush1.msra.mxu0 0.0
    %736 = vmatprep.subr.mxu0 0.0
    %737 = vmatpush1.msra.mxu0 0.0
    %738 = vmatprep.subr.mxu0 0.0
    %739 = vmatpush1.msra.mxu0 0.0
    %740 = vmatprep.subr.mxu0 0.0
    %741 = vmatpush1.msra.mxu0 0.0
    %742 = vmatprep.subr.mxu0 0.0
    %743 = vmatpush1.msra.mxu0 0.0
    %744 = vmatprep.subr.mxu0 0.0
    %745 = vmatpush1.msra.mxu0 0.0
    %746 = vmatprep.subr.mxu0 0.0
    %747 = vmatpush1.msra.mxu0 0.0
    %748 = vmatprep.subr.mxu0 0.0
    %749 = vmatpush1.msra.mxu0 0.0
    %750 = vmatprep.subr.mxu0 0.0
    %751 = vmatpush1.msra.mxu0 0.0
    %752 = vmatprep.subr.mxu0 0.0
    %753 = vmatpush1.msra.mxu0 0.0
    %754 = vmatprep.mubr.f32.mxu0 0.0
    %755 = vmatmul.mubr.f32.gmra.mrb[0].mxu0 %v642
    %v756 = vpop.f32.mrb[0].mxu0
    %v757 = vadd.f32 %v688, %v756
    %v758 = vpop.f32.mrb[0].mxu0
    %759 = vmatprep.mubr.f32.mxu0 0.0
    %760 = vmatmul.mubr.f32.gmra.mrb[0].mxu0 %v643
    %v761 = vpop.f32.mrb[0].mxu0
    %v762 = vadd.f32 %v688, %v761
    %v763 = vpop.f32.mrb[0].mxu0
    %764 = vmatprep.mubr.f32.mxu0 0.0
    %765 = vmatmul.mubr.f32.gmra.mrb[0].mxu0 %v644
    %v766 = vpop.f32.mrb[0].mxu0
    %v767 = vadd.f32 %v688, %v766
    %v768 = vpop.f32.mrb[0].mxu0
    %769 = vmatprep.mubr.f32.mxu0 0.0
    %770 = vmatmul.mubr.f32.gmra.mrb[0].mxu0 %v645
    %v771 = vpop.f32.mrb[0].mxu0
    %v772 = vadd.f32 %v688, %v771
    %v773 = vpop.f32.mrb[0].mxu0
    %774 = vmatprep.mubr.f32.mxu0 0.0
    %775 = vmatmul.mubr.f32.gmra.mrb[0].mxu0 %v646
    %v776 = vpop.f32.mrb[0].mxu0
    %v777 = vadd.f32 %v688, %v776
    %v778 = vpop.f32.mrb[0].mxu0
    %779 = vmatprep.mubr.f32.mxu0 0.0
    %780 = vmatmul.mubr.f32.gmra.mrb[0].mxu0 %v647
    %v781 = vpop.f32.mrb[0].mxu0
    %v782 = vadd.f32 %v688, %v781
    %v783 = vpop.f32.mrb[0].mxu0
    %784 = vmatprep.mubr.f32.mxu0 0.0
    %785 = vmatmul.mubr.f32.gmra.mrb[0].mxu0 %v648
    %v786 = vpop.f32.mrb[0].mxu0
    %v787 = vadd.f32 %v688, %v786
    %v788 = vpop.f32.mrb[0].mxu0
    %789 = vmatprep.mubr.f32.mxu0 0.0
    %790 = vmatmul.mubr.f32.gmra.mrb[0].mxu0 %v649
    %v791 = vpop.f32.mrb[0].mxu0
    %v792 = vadd.f32 %v688, %v791
    %v793 = vpop.f32.mrb[0].mxu0
    %794 = vmatprep.mubr.f32.mxu0 0.0
    %795 = vmatmul.mubr.f32.gmra.mrb[0].mxu0 %v650
    %v796 = vpop.f32.mrb[0].mxu0
    %v797 = vadd.f32 %v688, %v796
    %v798 = vpop.f32.mrb[0].mxu0
    %799 = vmatprep.mubr.f32.mxu0 0.0
    %800 = vmatmul.mubr.f32.gmra.mrb[0].mxu0 %v651
    %v801 = vpop.f32.mrb[0].mxu0
    %v802 = vadd.f32 %v688, %v801
    %v803 = vpop.f32.mrb[0].mxu0
    %804 = vmatprep.mubr.f32.mxu0 0.0
    %805 = vmatmul.mubr.f32.gmra.mrb[0].mxu0 %v652
    %v806 = vpop.f32.mrb[0].mxu0
    %v807 = vadd.f32 %v688, %v806
    %v808 = vpop.f32.mrb[0].mxu0
    %809 = vmatprep.mubr.f32.mxu0 0.0
    %810 = vmatmul.mubr.f32.gmra.mrb[0].mxu0 %v653
    %v811 = vpop.f32.mrb[0].mxu0
    %v812 = vadd.f32 %v688, %v811
    %v813 = vpop.f32.mrb[0].mxu0
    %814 = vmatprep.mubr.f32.mxu0 0.0
    %815 = vmatmul.mubr.f32.gmra.mrb[0].mxu0 %v654
    %v816 = vpop.f32.mrb[0].mxu0
    %v817 = vadd.f32 %v688, %v816
    %v818 = vpop.f32.mrb[0].mxu0
    %819 = vmatprep.mubr.f32.mxu0 0.0
    %820 = vmatmul.mubr.f32.gmra.mrb[0].mxu0 %v655
    %v821 = vpop.f32.mrb[0].mxu0
    %v822 = vadd.f32 %v688, %v821
    %v823 = vpop.f32.mrb[0].mxu0
    %824 = vmatprep.mubr.f32.mxu0 0.0
    %825 = vmatmul.mubr.f32.gmra.mrb[0].mxu0 %v656
    %v826 = vpop.f32.mrb[0].mxu0
    %v827 = vadd.f32 %v688, %v826
    %v828 = vpop.f32.mrb[0].mxu0
    %829 = vmatprep.mubr.f32.mxu0 0.0
    %830 = vmatmul.mubr.f32.gmra.mrb[0].mxu0 %v657
    %v831 = vpop.f32.mrb[0].mxu0
    %v832 = vadd.f32 %v688, %v831
    %v833 = vpop.f32.mrb[0].mxu0
    %834 = vmatprep.mubr.f32.mxu0 0.0
    %835 = vmatmul.mubr.f32.gmra.mrb[0].mxu0 %v658
    %v836 = vpop.f32.mrb[0].mxu0
    %v837 = vadd.f32 %v688, %v836
    %v838 = vpop.f32.mrb[0].mxu0
    %839 = vmatprep.mubr.f32.mxu0 0.0
    %840 = vmatmul.mubr.f32.gmra.mrb[0].mxu0 %v659
    %v841 = vpop.f32.mrb[0].mxu0
    %v842 = vadd.f32 %v688, %v841
    %v843 = vpop.f32.mrb[0].mxu0
    %844 = vmatprep.mubr.f32.mxu0 0.0
    %845 = vmatmul.mubr.f32.gmra.mrb[0].mxu0 %v660
    %v846 = vpop.f32.mrb[0].mxu0
    %v847 = vadd.f32 %v688, %v846
    %v848 = vpop.f32.mrb[0].mxu0
    %849 = vmatprep.mubr.f32.mxu0 0.0
    %850 = vmatmul.mubr.f32.gmra.mrb[0].mxu0 %v661
    %v851 = vpop.f32.mrb[0].mxu0
    %v852 = vadd.f32 %v688, %v851
    %v853 = vpop.f32.mrb[0].mxu0
    %854 = vmatprep.mubr.f32.mxu0 0.0
    %855 = vmatmul.mubr.f32.gmra.mrb[0].mxu0 %v662
    %v856 = vpop.f32.mrb[0].mxu0
    %v857 = vadd.f32 %v688, %v856
    %v858 = vpop.f32.mrb[0].mxu0
    %859 = vmatprep.mubr.f32.mxu0 0.0
    %860 = vmatmul.mubr.f32.gmra.mrb[0].mxu0 %v663
    %v861 = vpop.f32.mrb[0].mxu0
    %v862 = vadd.f32 %v688, %v861
    %v863 = vpop.f32.mrb[0].mxu0
    %864 = vmatprep.mubr.f32.mxu0 0.0
    %865 = vmatmul.mubr.f32.gmra.mrb[0].mxu0 %v664
    %v866 = vpop.f32.mrb[0].mxu0
    %v867 = vadd.f32 %v688, %v866
    %v868 = vpop.f32.mrb[0].mxu0
    %869 = vmatprep.mubr.f32.mxu0 0.0
    %870 = vmatmul.mubr.f32.gmra.mrb[0].mxu0 %v665
    %v871 = vpop.f32.mrb[0].mxu0
    %v872 = vadd.f32 %v688, %v871
    %v873 = vpop.f32.mrb[0].mxu0
    %874 = vmatprep.mubr.f32.mxu0 0.0
    %875 = vmatmul.mubr.f32.gmra.mrb[0].mxu0 %v666
    %v876 = vpop.f32.mrb[0].mxu0
    %v877 = vadd.f32 %v688, %v876
    %v878 = vpop.f32.mrb[0].mxu0
    %879 = vdwg.mxu0
    %880 = vmax.xlane.f32.xlu0 %v757
    %v881 = vpop.xlane.xlu0 %880
    %882 = vmax.xlane.f32.xlu0 %v762
    %v883 = vpop.xlane.xlu0 %882
    %884 = vmax.xlane.f32.xlu0 %v767
    %v885 = vpop.xlane.xlu0 %884
    %886 = vmax.xlane.f32.xlu0 %v772
    %v887 = vpop.xlane.xlu0 %886
    %888 = vmax.xlane.f32.xlu0 %v777
    %v889 = vpop.xlane.xlu0 %888
    %890 = vmax.xlane.f32.xlu0 %v782
    %v891 = vpop.xlane.xlu0 %890
    %892 = vmax.xlane.f32.xlu0 %v787
    %v893 = vpop.xlane.xlu0 %892
    %894 = vmax.xlane.f32.xlu0 %v792
    %v895 = vpop.xlane.xlu0 %894
    %896 = vmax.xlane.f32.xlu0 %v797
    %v897 = vpop.xlane.xlu0 %896
    %898 = vmax.xlane.f32.xlu0 %v802
    %v899 = vpop.xlane.xlu0 %898
    %900 = vmax.xlane.f32.xlu0 %v807
    %v901 = vpop.xlane.xlu0 %900
    %902 = vmax.xlane.f32.xlu0 %v812
    %v903 = vpop.xlane.xlu0 %902
    %904 = vmax.xlane.f32.xlu0 %v817
    %v905 = vpop.xlane.xlu0 %904
    %906 = vmax.xlane.f32.xlu0 %v822
    %v907 = vpop.xlane.xlu0 %906
    %908 = vmax.xlane.f32.xlu0 %v827
    %v909 = vpop.xlane.xlu0 %908
    %910 = vmax.xlane.f32.xlu0 %v832
    %v911 = vpop.xlane.xlu0 %910
    %912 = vmax.xlane.f32.xlu0 %v837
    %v913 = vpop.xlane.xlu0 %912
    %914 = vmax.xlane.f32.xlu0 %v842
    %v915 = vpop.xlane.xlu0 %914
    %916 = vmax.xlane.f32.xlu0 %v847
    %v917 = vpop.xlane.xlu0 %916
    %918 = vmax.xlane.f32.xlu0 %v852
    %v919 = vpop.xlane.xlu0 %918
    %920 = vmax.xlane.f32.xlu0 %v857
    %v921 = vpop.xlane.xlu0 %920
    %922 = vmax.xlane.f32.xlu0 %v862
    %v923 = vpop.xlane.xlu0 %922
    %924 = vmax.xlane.f32.xlu0 %v867
    %v925 = vpop.xlane.xlu0 %924
    %926 = vmax.xlane.f32.xlu0 %v872
    %v927 = vpop.xlane.xlu0 %926
    %928 = vmax.xlane.f32.xlu0 %v877
    %v929 = vpop.xlane.xlu0 %928
    %v930 = vsub.f32 %v757, %v881
    %v931 = vsub.f32 %v762, %v883
    %v932 = vsub.f32 %v767, %v885
    %v933 = vsub.f32 %v772, %v887
    %v934 = vsub.f32 %v777, %v889
    %v935 = vsub.f32 %v782, %v891
    %v936 = vsub.f32 %v787, %v893
    %v937 = vsub.f32 %v792, %v895
    %v938 = vsub.f32 %v797, %v897
    %v939 = vsub.f32 %v802, %v899
    %v940 = vsub.f32 %v807, %v901
    %v941 = vsub.f32 %v812, %v903
    %v942 = vsub.f32 %v817, %v905
    %v943 = vsub.f32 %v822, %v907
    %v944 = vsub.f32 %v827, %v909
    %v945 = vsub.f32 %v832, %v911
    %v946 = vsub.f32 %v837, %v913
    %v947 = vsub.f32 %v842, %v915
    %v948 = vsub.f32 %v847, %v917
    %v949 = vsub.f32 %v852, %v919
    %v950 = vsub.f32 %v857, %v921
    %v951 = vsub.f32 %v862, %v923
    %v952 = vsub.f32 %v867, %v925
    %v953 = vsub.f32 %v872, %v927
    %v954 = vsub.f32 %v877, %v929
    %v955 = vmul.f32 %v930, 1.442695
    %v956 = vpow.pop %v955
    %v957 = vmul.f32 %v931, 1.442695
    %v958 = vpow.pop %v957
    %v959 = vmul.f32 %v932, 1.442695
    %v960 = vpow.pop %v959
    %v961 = vmul.f32 %v933, 1.442695
    %v962 = vpow.pop %v961
    %v963 = vmul.f32 %v934, 1.442695
    %v964 = vpow.pop %v963
    %v965 = vmul.f32 %v935, 1.442695
    %v966 = vpow.pop %v965
    %v967 = vmul.f32 %v936, 1.442695
    %v968 = vpow.pop %v967
    %v969 = vmul.f32 %v937, 1.442695
    %v970 = vpow.pop %v969
    %v971 = vmul.f32 %v938, 1.442695
    %v972 = vpow.pop %v971
    %v973 = vmul.f32 %v939, 1.442695
    %v974 = vpow.pop %v973
    %v975 = vmul.f32 %v940, 1.442695
    %v976 = vpow.pop %v975
    %v977 = vmul.f32 %v941, 1.442695
    %v978 = vpow.pop %v977
    %v979 = vmul.f32 %v942, 1.442695
    %v980 = vpow.pop %v979
    %v981 = vmul.f32 %v943, 1.442695
    %v982 = vpow.pop %v981
    %v983 = vmul.f32 %v944, 1.442695
    %v984 = vpow.pop %v983
    %v985 = vmul.f32 %v945, 1.442695
    %v986 = vpow.pop %v985
    %v987 = vmul.f32 %v946, 1.442695
    %v988 = vpow.pop %v987
    %v989 = vmul.f32 %v947, 1.442695
    %v990 = vpow.pop %v989
    %v991 = vmul.f32 %v948, 1.442695
    %v992 = vpow.pop %v991
    %v993 = vmul.f32 %v949, 1.442695
    %v994 = vpow.pop %v993
    %v995 = vmul.f32 %v950, 1.442695
    %v996 = vpow.pop %v995
    %v997 = vmul.f32 %v951, 1.442695
    %v998 = vpow.pop %v997
    %v999 = vmul.f32 %v952, 1.442695
    %v1000 = vpow.pop %v999
    %v1001 = vmul.f32 %v953, 1.442695
    %v1002 = vpow.pop %v1001
    %v1003 = vmul.f32 %v954, 1.442695
    %v1004 = vpow.pop %v1003
    %1005 = vadd.xlane.f32.xlu0 %v956
    %v1006 = vpop.xlane.xlu0 %1005
    %1007 = vadd.xlane.f32.xlu0 %v958
    %v1008 = vpop.xlane.xlu0 %1007
    %1009 = vadd.xlane.f32.xlu0 %v960
    %v1010 = vpop.xlane.xlu0 %1009
    %1011 = vadd.xlane.f32.xlu0 %v962
    %v1012 = vpop.xlane.xlu0 %1011
    %1013 = vadd.xlane.f32.xlu0 %v964
    %v1014 = vpop.xlane.xlu0 %1013
    %1015 = vadd.xlane.f32.xlu0 %v966
    %v1016 = vpop.xlane.xlu0 %1015
    %1017 = vadd.xlane.f32.xlu0 %v968
    %v1018 = vpop.xlane.xlu0 %1017
    %1019 = vadd.xlane.f32.xlu0 %v970
    %v1020 = vpop.xlane.xlu0 %1019
    %1021 = vadd.xlane.f32.xlu0 %v972
    %v1022 = vpop.xlane.xlu0 %1021
    %1023 = vadd.xlane.f32.xlu0 %v974
    %v1024 = vpop.xlane.xlu0 %1023
    %1025 = vadd.xlane.f32.xlu0 %v976
    %v1026 = vpop.xlane.xlu0 %1025
    %1027 = vadd.xlane.f32.xlu0 %v978
    %v1028 = vpop.xlane.xlu0 %1027
    %1029 = vadd.xlane.f32.xlu0 %v980
    %v1030 = vpop.xlane.xlu0 %1029
    %1031 = vadd.xlane.f32.xlu0 %v982
    %v1032 = vpop.xlane.xlu0 %1031
    %1033 = vadd.xlane.f32.xlu0 %v984
    %v1034 = vpop.xlane.xlu0 %1033
    %1035 = vadd.xlane.f32.xlu0 %v986
    %v1036 = vpop.xlane.xlu0 %1035
    %1037 = vadd.xlane.f32.xlu0 %v988
    %v1038 = vpop.xlane.xlu0 %1037
    %1039 = vadd.xlane.f32.xlu0 %v990
    %v1040 = vpop.xlane.xlu0 %1039
    %1041 = vadd.xlane.f32.xlu0 %v992
    %v1042 = vpop.xlane.xlu0 %1041
    %1043 = vadd.xlane.f32.xlu0 %v994
    %v1044 = vpop.xlane.xlu0 %1043
    %1045 = vadd.xlane.f32.xlu0 %v996
    %v1046 = vpop.xlane.xlu0 %1045
    %1047 = vadd.xlane.f32.xlu0 %v998
    %v1048 = vpop.xlane.xlu0 %1047
    %1049 = vadd.xlane.f32.xlu0 %v1000
    %v1050 = vpop.xlane.xlu0 %1049
    %1051 = vadd.xlane.f32.xlu0 %v1002
    %v1052 = vpop.xlane.xlu0 %1051
    %1053 = vadd.xlane.f32.xlu0 %v1004
    %v1054 = vpop.xlane.xlu0 %1053
    %v1055 = vrcp.pop %v1006
    %v1056 = vmul.f32 %v956, %v1055
    %v1057 = vrcp.pop %v1008
    %v1058 = vmul.f32 %v958, %v1057
    %v1059 = vrcp.pop %v1010
    %v1060 = vmul.f32 %v960, %v1059
    %v1061 = vrcp.pop %v1012
    %v1062 = vmul.f32 %v962, %v1061
    %v1063 = vrcp.pop %v1014
    %v1064 = vmul.f32 %v964, %v1063
    %v1065 = vrcp.pop %v1016
    %v1066 = vmul.f32 %v966, %v1065
    %v1067 = vrcp.pop %v1018
    %v1068 = vmul.f32 %v968, %v1067
    %v1069 = vrcp.pop %v1020
    %v1070 = vmul.f32 %v970, %v1069
    %v1071 = vrcp.pop %v1022
    %v1072 = vmul.f32 %v972, %v1071
    %v1073 = vrcp.pop %v1024
    %v1074 = vmul.f32 %v974, %v1073
    %v1075 = vrcp.pop %v1026
    %v1076 = vmul.f32 %v976, %v1075
    %v1077 = vrcp.pop %v1028
    %v1078 = vmul.f32 %v978, %v1077
    %v1079 = vrcp.pop %v1030
    %v1080 = vmul.f32 %v980, %v1079
    %v1081 = vrcp.pop %v1032
    %v1082 = vmul.f32 %v982, %v1081
    %v1083 = vrcp.pop %v1034
    %v1084 = vmul.f32 %v984, %v1083
    %v1085 = vrcp.pop %v1036
    %v1086 = vmul.f32 %v986, %v1085
    %v1087 = vrcp.pop %v1038
    %v1088 = vmul.f32 %v988, %v1087
    %v1089 = vrcp.pop %v1040
    %v1090 = vmul.f32 %v990, %v1089
    %v1091 = vrcp.pop %v1042
    %v1092 = vmul.f32 %v992, %v1091
    %v1093 = vrcp.pop %v1044
    %v1094 = vmul.f32 %v994, %v1093
    %v1095 = vrcp.pop %v1046
    %v1096 = vmul.f32 %v996, %v1095
    %v1097 = vrcp.pop %v1048
    %v1098 = vmul.f32 %v998, %v1097
    %v1099 = vrcp.pop %v1050
    %v1100 = vmul.f32 %v1000, %v1099
    %v1101 = vrcp.pop %v1052
    %v1102 = vmul.f32 %v1002, %v1101
    %v1103 = vrcp.pop %v1054
    %v1104 = vmul.f32 %v1004, %v1103
    %1105 = vst [vmem:[#allocation8] sm:$0xff] %v1056
    %1106 = vst [vmem:[#allocation8 + $0x8] sm:$0xff] %v1058
    %1107 = vst [vmem:[#allocation8 + $0x10] sm:$0xff] %v1060
    %1108 = vst [vmem:[#allocation8 + $0x18] sm:$0xff] %v1062
    %1109 = vst [vmem:[#allocation8 + $0x20] sm:$0xff] %v1064
    %1110 = vst [vmem:[#allocation8 + $0x28] sm:$0xff] %v1066
    %1111 = vst [vmem:[#allocation8 + $0x30] sm:$0xff] %v1068
    %1112 = vst [vmem:[#allocation8 + $0x38] sm:$0xff] %v1070
    %1113 = vst [vmem:[#allocation8 + $0x40] sm:$0xff] %v1072
    %1114 = vst [vmem:[#allocation8 + $0x48] sm:$0xff] %v1074
    %1115 = vst [vmem:[#allocation8 + $0x50] sm:$0xff] %v1076
    %1116 = vst [vmem:[#allocation8 + $0x58] sm:$0xff] %v1078
    %1117 = vst [vmem:[#allocation8 + $0x60] sm:$0xff] %v1080
    %1118 = vst [vmem:[#allocation8 + $0x68] sm:$0xff] %v1082
    %1119 = vst [vmem:[#allocation8 + $0x70] sm:$0xff] %v1084
    %1120 = vst [vmem:[#allocation8 + $0x78] sm:$0xff] %v1086
    %1121 = vst [vmem:[#allocation8 + $0x80] sm:$0xff] %v1088
    %1122 = vst [vmem:[#allocation8 + $0x88] sm:$0xff] %v1090
    %1123 = vst [vmem:[#allocation8 + $0x90] sm:$0xff] %v1092
    %1124 = vst [vmem:[#allocation8 + $0x98] sm:$0xff] %v1094
    %1125 = vst [vmem:[#allocation8 + $0xa0] sm:$0xff] %v1096
    %1126 = vst [vmem:[#allocation8 + $0xa8] sm:$0xff] %v1098
    %1127 = vst [vmem:[#allocation8 + $0xb0] sm:$0xff] %v1100
    %1128 = vst [vmem:[#allocation8 + $0xb8] sm:$0xff] %v1102
    %1129 = vst [vmem:[#allocation8 + $0xc0] sm:$0xff] %v1104
    // Predicated region
    $region34: #{tpu_custom_call.1} parent=1 // pred_check
      _
    $region35: #{tpu_custom_call.1} parent=1 // pred_check_branch
      %1131 = sbr.rel (0) target = $region37
    $region36: #{tpu_custom_call.1} parent=1 // pred_region
      %s1133 = ssub.s32 3200, 3200
      %1134 = vsyncadd [#allocation4], %s1133
      %s1135 = sshll.u32 [#allocation8], 4
      %s1136 = int_to_ptr.vmem [resolvable:$true] %s1135
      %1141 = dma.vmem_to_hbm [thread:$0]  %s1136, 3200, %s5, [#allocation4], 128, 128, 8
    $region37: #{tpu_custom_call.1} parent=1 // pred_fallthru
      _
    // Predicated region
    $region38: #{tpu_custom_call.1} parent=1 // pred_check
      _
    $region39: #{tpu_custom_call.1} parent=1 // pred_check_branch
      %1143 = sbr.rel (0) target = $region41
    $region40: #{tpu_custom_call.1} parent=1 // pred_region
      %1144 = dma.done [#allocation4], 3200
    $region41: #{tpu_custom_call.1} parent=1 // pred_fallthru
      _
    %1145 = vsyncpa [#allocation3], 1
    %1146 = vsyncpa [#allocation6], 1
    %1147 = vsyncpa [#allocation4], 1

</llo_original>
